<compile_context>
chip_gen: v7x
topology: tpu7x:2x2x1
jax: 0.10.0
libtpu: 0.0.40
codegen_flags: <defaults>
</compile_context>

<pallas_src>
import jax
import jax.numpy as jnp
from jax.experimental import pallas as pl
from jax.experimental.pallas import tpu as pltpu


def _round_up(x, m):
    return ((x + m - 1) // m) * m


def _residual_block_kernel(x_ref, w_ref, b_ref, o_ref):
    # x_ref: (tm, H) f32 VMEM tile (auto-pipelined; last block may be partial,
    #        its OOB rows hold garbage but their stores are masked by Pallas).
    # w_ref: (H, H) compute-dtype VMEM block; constant index_map -> fetched
    #        once and resident across all grid steps (per core).
    # b_ref: (1, H) f32 VMEM.
    # o_ref: (tm, H) f32 VMEM tile.
    x = x_ref[...]                                            # f32 residual source
    y = jnp.dot(x.astype(w_ref.dtype), w_ref[...],
                preferred_element_type=jnp.float32)           # MXU, f32 accumulate
    y = y + b_ref[...]                                        # bias broadcast (f32, VPU)
    o_ref[...] = (jnp.tanh(y) + x).astype(o_ref.dtype)        # tanh (EUP) + residual


def residual_block(x, w, b, *, tm=512, use_bf16=True):
    """out = tanh(x @ w + b) + x   (PyTorch: Tanh(Linear(x)) + x)

    x: (M, H) f32;  w: (H, H) f32 (transpose of torch's (out, in));  b: (H,).
    """
    M, H = x.shape
    assert w.shape == (H, H) and b.shape == (H,)

    compute_dtype = jnp.bfloat16 if use_bf16 else x.dtype
    w_c = w.astype(compute_dtype)
    b2 = b.reshape(1, H).astype(jnp.float32)

    wbytes = jnp.dtype(compute_dtype).itemsize
    xbytes = jnp.dtype(x.dtype).itemsize

    # Generation-aware VMEM budget (~85% of physical per-core VMEM: ~54 MiB on
    # v7x, ~108 MiB on v5e/v6e), with a conservative fallback.
    try:
        vmem_cap = int(pltpu.get_tpu_info().vmem_capacity_bytes)
    except Exception:
        vmem_cap = 64 * 1024 * 1024
    vmem_cap = int(vmem_cap * 0.85)

    def footprint(t):
        return (2 * H * H * wbytes        # weight block (pipeline may hold 2 bufs)
                + 2 * t * H * xbytes      # x tiles (double-buffered)
                + 2 * t * H * xbytes      # out tiles (double-buffered)
                + 2 * H * 4)              # bias

    # Batch tile: multiple of 8 (sublane), clamped to the (rounded) batch and
    # shrunk until the working set fits the per-generation VMEM budget.
    tm_eff = min(_round_up(tm, 8), _round_up(M, 8))
    while tm_eff > 64 and footprint(tm_eff) > vmem_cap:
        tm_eff = max(64, _round_up(tm_eff // 2, 8))
    # TODO(synk): if footprint(64) still exceeds vmem_cap (huge H), fall back
    # to an (M, N, K)-tiled grid with an accumulator scratch.

    grid = (pl.cdiv(M, tm_eff),)          # partial last block handled by Pallas

    needed = footprint(tm_eff)
    vmem_limit = int(min(2 * needed + (4 << 20), vmem_cap))

    cost = pl.CostEstimate(
        flops=2 * M * H * H,
        transcendentals=M * H,
        bytes_accessed=(2 * M * H * xbytes + H * H * wbytes + H * 4),
    )

    out = pl.pallas_call(
        _residual_block_kernel,
        out_shape=jax.ShapeDtypeStruct((M, H), x.dtype),
        grid_spec=pltpu.PrefetchScalarGridSpec(
            num_scalar_prefetch=0,
            grid=grid,
            in_specs=[
                pl.BlockSpec((tm_eff, H), lambda i: (i, 0)),   # x tile
                pl.BlockSpec((H, H), lambda i: (0, 0)),        # weight (resident)
                pl.BlockSpec((1, H), lambda i: (0, 0)),        # bias
            ],
            out_specs=pl.BlockSpec((tm_eff, H), lambda i: (i, 0)),
        ),
        compiler_params=pltpu.CompilerParams(
            # Weight/bias blocks are BlockSpec-managed (per-core fetch), so the
            # batch axis can be sharded across v7x's two TensorCores.
            dimension_semantics=("parallel",),
            vmem_limit_bytes=vmem_limit,
        ),
        cost_estimate=cost,
    )(x, w_c, b2)
    return out


if __name__ == "__main__":
    key = jax.random.PRNGKey(0)
    kx1, kx2, kw, kb = jax.random.split(key, 4)

    hidden = 128
    bound = 1.0 / jnp.sqrt(hidden)
    # Torch Linear weight is (out, in); we store its transpose (in, out) so the
    # kernel computes x @ w directly.
    w = jax.random.uniform(kw, (hidden, hidden), minval=-bound, maxval=bound,
                           dtype=jnp.float32)
    b = jax.random.uniform(kb, (hidden,), minval=-bound, maxval=bound,
                           dtype=jnp.float32)

    # Test 1: tiny non-divisible batch (exercises the masked partial block),
    # pure f32 math, tight tolerance proves the fused structure is exact.
    x1 = jax.random.normal(kx1, (10, hidden), dtype=jnp.float32)
    out1 = jax.block_until_ready(residual_block(x1, w, b, use_bf16=False))
    ref1 = jnp.tanh(x1 @ w + b) + x1
    assert out1.shape == x1.shape
    assert jnp.allclose(out1, ref1, atol=1e-5, rtol=1e-5), "f32 path mismatch"

    # Test 2: multi-step grid with a non-divisible tail (weight residency
    # across steps + masked last block) using bf16 MXU operands + f32
    # accumulation; tolerance relaxed for bf16 operands.
    x2 = jax.random.normal(kx2, (300, hidden), dtype=jnp.float32)
    out2 = jax.block_until_ready(residual_block(x2, w, b, tm=128, use_bf16=True))
    ref2 = jnp.tanh(x2 @ w + b) + x2
    assert out2.shape == x2.shape
    assert jnp.allclose(out2, ref2, atol=2e-2, rtol=2e-2), "bf16 path mismatch"

    print("KERNEL_OK")
</pallas_src>

<mosaic_0001>
module attributes {stable_mosaic.version = 11 : i64} {
  func.func @_residual_block_kernel(%arg0: i32, %arg1: memref<16x128xf32, #tpu.memory_space<vmem>>, %arg2: memref<128x128xf32, #tpu.memory_space<vmem>>, %arg3: memref<1x128xf32, #tpu.memory_space<vmem>>, %arg4: memref<16x128xf32, #tpu.memory_space<vmem>>) attributes {dimension_semantics = [#tpu.dimension_semantics<parallel>], iteration_bounds = array<i64: 1>, scalar_prefetch = 0 : i64, scratch_operands = 0 : i64, tpu.core_type = #tpu.core_type<tc>, window_params = [{transform_indices = @transform_0, window_bounds = array<i64: 16, 128>}, {pipeline_mode = #tpu.pipeline_mode<synchronous>, transform_indices = @transform_1, window_bounds = array<i64: 128, 128>}, {pipeline_mode = #tpu.pipeline_mode<synchronous>, transform_indices = @transform_2, window_bounds = array<i64: 1, 128>}, {transform_indices = @transform_3, window_bounds = array<i64: 16, 128>}]} {
    %c0 = arith.constant 0 : index
    %c0_0 = arith.constant 0 : index
    %0 = vector.load %arg1[%c0, %c0_0] : memref<16x128xf32, #tpu.memory_space<vmem>>, vector<16x128xf32>
    %c0_1 = arith.constant 0 : index
    %c0_2 = arith.constant 0 : index
    %1 = vector.load %arg2[%c0_1, %c0_2] : memref<128x128xf32, #tpu.memory_space<vmem>>, vector<128x128xf32>
    %cst = arith.constant dense<0.000000e+00> : vector<16x128xf32>
    %2 = tpu.matmul %0, %1, %cst {dimension_numbers = #tpu.dot_dimension_numbers<[1], [0], [0], [1], [0, 0, 1, 1], [], []>} : vector<16x128xf32>, vector<128x128xf32>, vector<16x128xf32> -> vector<16x128xf32>
    %c0_3 = arith.constant 0 : index
    %c0_4 = arith.constant 0 : index
    %3 = vector.load %arg3[%c0_3, %c0_4] : memref<1x128xf32, #tpu.memory_space<vmem>>, vector<1x128xf32>
    %4 = vector.broadcast %3 : vector<1x128xf32> to vector<16x128xf32>
    %5 = arith.addf %2, %4 : vector<16x128xf32>
    %6 = math.tanh %5 : vector<16x128xf32>
    %7 = arith.addf %6, %0 : vector<16x128xf32>
    %c0_5 = arith.constant 0 : index
    %c0_6 = arith.constant 0 : index
    %8 = vector.load %arg4[%c0_5, %c0_6] : memref<16x128xf32, #tpu.memory_space<vmem>>, vector<16x128xf32>
    tpu.vector_store %arg4[%c0_5, %c0_6], %7 {strides = array<i32>} : memref<16x128xf32, #tpu.memory_space<vmem>>, vector<16x128xf32>,
    return
  }
  func.func @transform_0(%arg0: i32) -> (i32, i32) {
    %c0_i32 = arith.constant 0 : i32
    %c0_i32_0 = arith.constant 0 : i32
    return %arg0, %c0_i32 : i32, i32
  }
  func.func @transform_1(%arg0: i32) -> (i32, i32) {
    %c0_i32 = arith.constant 0 : i32
    %c0_i32_0 = arith.constant 0 : i32
    %c0_i32_1 = arith.constant 0 : i32
    return %c0_i32, %c0_i32_0 : i32, i32
  }
  func.func @transform_2(%arg0: i32) -> (i32, i32) {
    %c0_i32 = arith.constant 0 : i32
    %c0_i32_0 = arith.constant 0 : i32
    %c0_i32_1 = arith.constant 0 : i32
    return %c0_i32, %c0_i32_0 : i32, i32
  }
  func.func @transform_3(%arg0: i32) -> (i32, i32) {
    %c0_i32 = arith.constant 0 : i32
    %c0_i32_0 = arith.constant 0 : i32
    return %arg0, %c0_i32 : i32, i32
  }
}

</mosaic_0001>

<llo_original>
// kernel: tpu_custom_call.1
$region0: #{tpu_custom_call.1}
  #allocation0 [shape = 'u32[]', space=smem, size = 0x4, offset = 0x4, fixed_abs, tag = 'smem constant byte address 0x4 - core index']
  #allocation1 [shape = 'u32[144,128]{1,0:T(1,128)}', space=vmem, size = 0x12000, scoped, tag = 'internal scratch']
  %s0 = inlined_call_operand.hbm [shape: f32[10,128], index: 0, kind: input, shape index: {}]
  %s1 = inlined_call_operand.hbm [shape: f32[128,128], index: 1, kind: input, shape index: {}]
  %s2 = inlined_call_operand.vmem [shape: f32[1,128], index: 2, kind: input, shape index: {}]
  %s3 = inlined_call_operand.hbm [shape: f32[10,128], index: 3, kind: output, shape index: {}]
  %s4 = sld [smem:[#allocation0]]
  $region30: #{tpu_custom_call.1} parent=0
    _
  %s6 = ssub.s32 1, %s4
  %s7 = scalar_select 0, %s6, %s4
  $region1: #{tpu_custom_call.1} parent=0
    #allocation2 [shape = 'u8[8192]{0}', space=vmem, size = 0x2000, scoped, tag = 'input window, operand 0, single buffered']
    #allocation3 [shape = 's32[1]{0}', space=sflag, size = 0x4, scoped, tag = 'scoped memory for tpu_custom_call.1']
    #allocation4 [shape = 's32[1]{0}', space=sflag, size = 0x4, scoped, tag = 'scoped memory for tpu_custom_call.1']
    #allocation5 [shape = 'u8[65536]{0}', space=vmem, size = 0x10000, scoped, tag = 'input window, operand 1, single buffered']
    #allocation6 [shape = 's32[1]{0}', space=sflag, size = 0x4, scoped, tag = 'scoped memory for tpu_custom_call.1']
    #allocation7 [shape = 'u8[8192]{0}', space=vmem, size = 0x2000, scoped, tag = 'output window, operand 0, single buffered']
    %8 = vsyncpa [#allocation3], 0
    %9 = vsyncpa [#allocation6], 0
    %10 = vsyncpa [#allocation4], 0
    // Predicated region
    $region2: #{tpu_custom_call.1} parent=1 // pred_check
      _
    $region3: #{tpu_custom_call.1} parent=1 // pred_check_branch
      %12 = sbr.rel (0) target = $region5
    $region4: #{tpu_custom_call.1} parent=1 // pred_region
      %s14 = ssub.s32 256, 256
      %15 = vsyncadd [#allocation3], %s14
      %s16 = sshll.u32 [#allocation2], 4
      %s17 = int_to_ptr.vmem [resolvable:$true] %s16
      %22 = dma.hbm_to_vmem [thread:$0]  %s0, 256, %s17, [#allocation3], 128, 128, 8
    $region5: #{tpu_custom_call.1} parent=1 // pred_fallthru
      _
    // Predicated region
    $region6: #{tpu_custom_call.1} parent=1 // pred_check
      _
    $region7: #{tpu_custom_call.1} parent=1 // pred_check_branch
      %24 = sbr.rel (0) target = $region9
    $region8: #{tpu_custom_call.1} parent=1 // pred_region
      %s26 = ssub.s32 2048, 2048
      %27 = vsyncadd [#allocation6], %s26
      %s28 = sshll.u32 [#allocation5], 4
      %s29 = int_to_ptr.vmem [resolvable:$true] %s28
      %34 = dma.hbm_to_vmem [thread:$0]  %s1, 2048, %s29, [#allocation6], 128, 128, 8
    $region9: #{tpu_custom_call.1} parent=1 // pred_fallthru
      _
    // Predicated region
    $region10: #{tpu_custom_call.1} parent=1 // pred_check
      _
    $region11: #{tpu_custom_call.1} parent=1 // pred_check_branch
      %36 = sbr.rel (0) target = $region13
    $region12: #{tpu_custom_call.1} parent=1 // pred_region
      _
    $region13: #{tpu_custom_call.1} parent=1 // pred_fallthru
      _
    // Predicated region
    $region14: #{tpu_custom_call.1} parent=1 // pred_check
      _
    $region15: #{tpu_custom_call.1} parent=1 // pred_check_branch
      %38 = sbr.rel (0) target = $region17
    $region16: #{tpu_custom_call.1} parent=1 // pred_region
      %39 = dma.done [#allocation3], 256
    $region17: #{tpu_custom_call.1} parent=1 // pred_fallthru
      _
    // Predicated region
    $region18: #{tpu_custom_call.1} parent=1 // pred_check
      _
    $region19: #{tpu_custom_call.1} parent=1 // pred_check_branch
      %41 = sbr.rel (0) target = $region21
    $region20: #{tpu_custom_call.1} parent=1 // pred_region
      %42 = dma.done [#allocation6], 2048
    $region21: #{tpu_custom_call.1} parent=1 // pred_fallthru
      _
    %v43 = vld [vmem:[#allocation2] sm:$0xff]
    %v44 = vld [vmem:[#allocation2 + $0x8] sm:$0xff]
    %v45 = vld [vmem:[#allocation5] sm:$0xff]
    %v46 = vld [vmem:[#allocation5 + $0x8] sm:$0xff]
    %v47 = vld [vmem:[#allocation5 + $0x10] sm:$0xff]
    %v48 = vld [vmem:[#allocation5 + $0x18] sm:$0xff]
    %v49 = vld [vmem:[#allocation5 + $0x20] sm:$0xff]
    %v50 = vld [vmem:[#allocation5 + $0x28] sm:$0xff]
    %v51 = vld [vmem:[#allocation5 + $0x30] sm:$0xff]
    %v52 = vld [vmem:[#allocation5 + $0x38] sm:$0xff]
    %v53 = vld [vmem:[#allocation5 + $0x40] sm:$0xff]
    %v54 = vld [vmem:[#allocation5 + $0x48] sm:$0xff]
    %v55 = vld [vmem:[#allocation5 + $0x50] sm:$0xff]
    %v56 = vld [vmem:[#allocation5 + $0x58] sm:$0xff]
    %v57 = vld [vmem:[#allocation5 + $0x60] sm:$0xff]
    %v58 = vld [vmem:[#allocation5 + $0x68] sm:$0xff]
    %v59 = vld [vmem:[#allocation5 + $0x70] sm:$0xff]
    %v60 = vld [vmem:[#allocation5 + $0x78] sm:$0xff]
    %v61 = vld [vmem:[%s2] sm:$0x1]
    %v63 = vlaneseq
    %v64 = vshrl.u32 %v63, 7
    %v65 = vsub.s32 0, %v64
    %v66 = vrot.slane %v61, %v65
    %68 = vmatprep.subr.mxu0 0.0
    %69 = vmatpush1.msra.mxu0 %v45
    %70 = vmatprep.subr.mxu0 0.0
    %71 = vmatpush1.msra.mxu0 %v46
    %72 = vmatprep.subr.mxu0 0.0
    %73 = vmatpush1.msra.mxu0 %v47
    %74 = vmatprep.subr.mxu0 0.0
    %75 = vmatpush1.msra.mxu0 %v48
    %76 = vmatprep.subr.mxu0 0.0
    %77 = vmatpush1.msra.mxu0 %v49
    %78 = vmatprep.subr.mxu0 0.0
    %79 = vmatpush1.msra.mxu0 %v50
    %80 = vmatprep.subr.mxu0 0.0
    %81 = vmatpush1.msra.mxu0 %v51
    %82 = vmatprep.subr.mxu0 0.0
    %83 = vmatpush1.msra.mxu0 %v52
    %84 = vmatprep.subr.mxu0 0.0
    %85 = vmatpush1.msra.mxu0 %v53
    %86 = vmatprep.subr.mxu0 0.0
    %87 = vmatpush1.msra.mxu0 %v54
    %88 = vmatprep.subr.mxu0 0.0
    %89 = vmatpush1.msra.mxu0 %v55
    %90 = vmatprep.subr.mxu0 0.0
    %91 = vmatpush1.msra.mxu0 %v56
    %92 = vmatprep.subr.mxu0 0.0
    %93 = vmatpush1.msra.mxu0 %v57
    %94 = vmatprep.subr.mxu0 0.0
    %95 = vmatpush1.msra.mxu0 %v58
    %96 = vmatprep.subr.mxu0 0.0
    %97 = vmatpush1.msra.mxu0 %v59
    %98 = vmatprep.subr.mxu0 0.0
    %99 = vmatpush1.msra.mxu0 %v60
    %100 = vmatprep.subr.mxu0 0.0
    %101 = vmatpush1.msra.mxu0 0.0
    %102 = vmatprep.subr.mxu0 0.0
    %103 = vmatpush1.msra.mxu0 0.0
    %104 = vmatprep.subr.mxu0 0.0
    %105 = vmatpush1.msra.mxu0 0.0
    %106 = vmatprep.subr.mxu0 0.0
    %107 = vmatpush1.msra.mxu0 0.0
    %108 = vmatprep.subr.mxu0 0.0
    %109 = vmatpush1.msra.mxu0 0.0
    %110 = vmatprep.subr.mxu0 0.0
    %111 = vmatpush1.msra.mxu0 0.0
    %112 = vmatprep.subr.mxu0 0.0
    %113 = vmatpush1.msra.mxu0 0.0
    %114 = vmatprep.subr.mxu0 0.0
    %115 = vmatpush1.msra.mxu0 0.0
    %116 = vmatprep.subr.mxu0 0.0
    %117 = vmatpush1.msra.mxu0 0.0
    %118 = vmatprep.subr.mxu0 0.0
    %119 = vmatpush1.msra.mxu0 0.0
    %120 = vmatprep.subr.mxu0 0.0
    %121 = vmatpush1.msra.mxu0 0.0
    %122 = vmatprep.subr.mxu0 0.0
    %123 = vmatpush1.msra.mxu0 0.0
    %124 = vmatprep.subr.mxu0 0.0
    %125 = vmatpush1.msra.mxu0 0.0
    %126 = vmatprep.subr.mxu0 0.0
    %127 = vmatpush1.msra.mxu0 0.0
    %128 = vmatprep.subr.mxu0 0.0
    %129 = vmatpush1.msra.mxu0 0.0
    %130 = vmatprep.subr.mxu0 0.0
    %131 = vmatpush1.msra.mxu0 0.0
    %132 = vmatprep.mubr.f32.mxu0 0.0
    %133 = vmatmul.mubr.f32.gmra.mrb[0].mxu0 %v43
    %v134 = vpop.f32.mrb[0].mxu0
    %v135 = vadd.f32 %v66, %v134
    %v136 = vpop.f32.mrb[0].mxu0
    %137 = vmatprep.mubr.f32.mxu0 0.0
    %138 = vmatmul.mubr.f32.gmra.mrb[0].mxu0 %v44
    %v139 = vpop.f32.mrb[0].mxu0
    %v140 = vadd.f32 %v66, %v139
    %v141 = vpop.f32.mrb[0].mxu0
    %142 = vdwg.mxu0
    %v143 = vtanh.pop %v135
    %v144 = vtanh.pop %v140
    %v145 = vadd.f32 %v143, %v43
    %v146 = vadd.f32 %v144, %v44
    %147 = vst [vmem:[#allocation7] sm:$0xff] %v145
    %148 = vst [vmem:[#allocation7 + $0x8] sm:$0xff] %v146
    // Predicated region
    $region22: #{tpu_custom_call.1} parent=1 // pred_check
      _
    $region23: #{tpu_custom_call.1} parent=1 // pred_check_branch
      %150 = sbr.rel (0) target = $region25
    $region24: #{tpu_custom_call.1} parent=1 // pred_region
      %s152 = ssub.s32 256, 256
      %153 = vsyncadd [#allocation4], %s152
      %s154 = sshll.u32 [#allocation7], 4
      %s155 = int_to_ptr.vmem [resolvable:$true] %s154
      %160 = dma.vmem_to_hbm [thread:$0]  %s155, 256, %s3, [#allocation4], 128, 128, 8
    $region25: #{tpu_custom_call.1} parent=1 // pred_fallthru
      _
    // Predicated region
    $region26: #{tpu_custom_call.1} parent=1 // pred_check
      _
    $region27: #{tpu_custom_call.1} parent=1 // pred_check_branch
      %162 = sbr.rel (0) target = $region29
    $region28: #{tpu_custom_call.1} parent=1 // pred_region
      %163 = dma.done [#allocation4], 256
    $region29: #{tpu_custom_call.1} parent=1 // pred_fallthru
      _
    %164 = vsyncpa [#allocation3], 1
    %165 = vsyncpa [#allocation6], 1
    %166 = vsyncpa [#allocation4], 1

</llo_original>
